<compile_context>
chip_gen: v5e
topology: v5e:2x2
jax: 0.10.0
libtpu: 0.0.40
codegen_flags: <defaults>
</compile_context>

<pallas_src>
import numpy as np
import jax
import jax.numpy as jnp
from jax import lax
from jax.experimental import pallas as pl
from jax.experimental.pallas import tpu as pltpu


# ----------------------------------------------------------------------------
# Deterministic parameter construction (mirrors lct.parpareparam).
# TODO(synk): definePsf / resamplingOperator are external helpers not shown in
# the reference snippet; reconstructed here from the standard LCT formulation so
# the parameters are deterministic and have the shapes __init__ implies.
# ----------------------------------------------------------------------------
def define_psf(spatial_grid, temprol_grid, slope):
    N, M = spatial_grid, temprol_grid
    x = np.arange(2 * N, dtype=np.float32) / (2 * N - 1) * 2.0 - 1.0
    y = x
    z = np.arange(2 * M, dtype=np.float32) / (2 * M - 1) * 2.0
    gy, gx, gz = np.meshgrid(y, x, z)                       # (2N, 2N, 2M)
    a = (4.0 * slope) ** 2 * (gx ** 2 + gy ** 2) - gz
    b = np.abs(a)
    c = np.min(b, axis=2, keepdims=True)
    d = (np.abs(b - c) < 1e-8).astype(np.float32)
    e = d / np.sqrt(np.sum(d ** 2))
    f = np.roll(np.roll(e, N, axis=0), N, axis=1)
    psf = np.transpose(f, (2, 0, 1))                        # (2M, 2N, 2N)
    return psf


def resampling_operator(temprol_grid):
    M = temprol_grid
    row, col = M ** 2, M
    x = np.arange(row, dtype=np.float64) + 1.0
    mtx = np.zeros((row, col), dtype=np.float64)
    mtx[np.arange(row), (np.ceil(np.sqrt(x)) - 1).astype(np.int64)] = 1.0
    mtx = mtx / np.sqrt(x)[:, None]
    mtxi = mtx.T.copy()
    K = int(np.log2(M))
    for _ in range(K):
        mtx = 0.5 * (mtx[0::2, :] + mtx[1::2, :])
        mtxi = 0.5 * (mtxi[:, 0::2] + mtxi[:, 1::2])
    return mtx.astype(np.float32), mtxi.astype(np.float32)


def make_lct_params(spatial=16, crop=16, bin_len=0.01, wall_size=2.0,
                    method='lct', material='diffuse'):
    assert 2 ** int(np.log2(crop)) == crop
    c = 3e8
    width = wall_size / 2.0
    bin_resolution = bin_len / c
    trange = crop * c * bin_resolution
    snr = 0.1
    slope = width / trange

    psf = define_psf(spatial, crop, slope)
    fpsf = np.fft.fftn(psf)
    if method == 'lct':
        invpsf = np.conjugate(fpsf) / (1.0 / snr + np.real(fpsf) ** 2 + np.imag(fpsf) ** 2)
    else:
        invpsf = np.conjugate(fpsf)

    invpsf_real = np.real(invpsf).astype(np.float32)[None]        # (1, 2T, 2H, 2W)
    invpsf_imag = np.imag(invpsf).astype(np.float32)[None]        # (1, 2T, 2H, 2W)
    learn_w = np.zeros((2,) + invpsf_real.shape[1:], np.float32)  # learnable, init 0
    mtx, mtxi = resampling_operator(crop)                         # (T, T), (T, T)
    gridz = np.arange(crop, dtype=np.float32) / (crop - 1)        # (T,)

    return dict(
        invpsf_real=jnp.asarray(invpsf_real),
        invpsf_imag=jnp.asarray(invpsf_imag),
        learn_w=jnp.asarray(learn_w),
        mtx=jnp.asarray(mtx),
        mtxi=jnp.asarray(mtxi),
        gridz=jnp.asarray(gridz),
        material=material,
    )


# ----------------------------------------------------------------------------
# Generation-aware VMEM budgeting (review: explicit budget, explicit limit)
# ----------------------------------------------------------------------------
def _vmem_capacity_bytes():
    try:
        return int(pltpu.get_tpu_info().vmem_capacity_bytes)
    except Exception:
        return 64 << 20          # conservative fallback: v7x per-TensorCore VMEM

_VMEM_CAP = _vmem_capacity_bytes()
# Explicit scoped-VMEM request: ~54 MiB on a 64 MiB/TC part (v7x), ~109 MiB on
# 128 MiB parts (v5e/v6e) -- replaces the 16/32 MiB scoped defaults.
_VMEM_LIMIT_BYTES = min(int(_VMEM_CAP * 0.85), 112 << 20)
# What our double-buffered blocks may consume; 48 MiB absolute cap keeps
# realistic-shape tiles safe on every generation while still giving >=2048-lane
# tiles (measured >=85% of HBM roofline needs only >=512-lane tiles).
_TILE_BUDGET_BYTES = min(int(_VMEM_LIMIT_BYTES * 0.7), 48 << 20)


def _pick_lane_block(S, rows_in, rows_out, resident_bytes,
                     budget=_TILE_BUDGET_BYTES):
    """Largest lane block that either is the full extent or is a multiple of 128
    dividing S, such that the per-grid-step working set
        2 (double buffer) * (rows_in + rows_out) * 4 B per lane column
        + resident weight bytes
    fits inside `budget`.  Only exact divisors are returned, so the grid never
    silently drops a tail (fixes the review's correctness concern)."""
    per_lane = 2 * (rows_in + rows_out) * 4
    cap = max(128, (budget - resident_bytes) // per_lane)
    if S <= cap:
        return S
    blk = (cap // 128) * 128
    while blk >= 128:
        if S % blk == 0:
            return blk
        blk -= 128
    # No 128-aligned divisor <= cap (only possible for exotic non-power-of-two
    # spatial grids): fall back to the full extent rather than dropping data.
    # TODO(synk): masked tail block for ragged lane extents.
    return S


# ----------------------------------------------------------------------------
# Pallas kernel: resampling matmul
# ----------------------------------------------------------------------------
def _resample_kernel(mtx_ref, x_ref, o_ref):
    """One (T,T) @ (T, hw_blk) MXU matmul per grid step.

    The batch axis is a fine-grained "parallel" grid dimension (per-step
    pipeline overhead ~0.35 us is negligible), so there is no per-batch Python
    unroll and the lane/N dimension of the single contraction is as wide as the
    VMEM budget allows.

    NOTE: the reference matmul uses lax.Precision.HIGHEST; default MXU f32
    precision is used here (validated inside the 1e-3 relative tolerance at
    these contraction depths).  Re-validate before switching inputs to bf16 or
    for very large crop."""
    o_ref[0] = jnp.dot(mtx_ref[...], x_ref[0],
                       preferred_element_type=jnp.float32)


def resample_matmul(mtx, x_bd_t_hw):
    BD, T, HW = x_bd_t_hw.shape
    resident = 2 * T * T * 4                      # resident mtx, double-buffer counted
    hw_blk = _pick_lane_block(HW, rows_in=T, rows_out=T, resident_bytes=resident)
    grid = (BD, HW // hw_blk)
    return pl.pallas_call(
        _resample_kernel,
        out_shape=jax.ShapeDtypeStruct((BD, T, HW), jnp.float32),
        grid=grid,
        in_specs=[pl.BlockSpec((T, T), lambda b, j: (0, 0)),            # resident
                  pl.BlockSpec((1, T, hw_blk), lambda b, j: (b, 0, j))],
        out_specs=pl.BlockSpec((1, T, hw_blk), lambda b, j: (b, 0, j)),
        compiler_params=pltpu.CompilerParams(
            dimension_semantics=("parallel", "parallel"),
            vmem_limit_bytes=_VMEM_LIMIT_BYTES),
    )(mtx, x_bd_t_hw)


# ----------------------------------------------------------------------------
# Forward pass (Pallas matmuls; FFTs + fused frequency filter in XLA)
# ----------------------------------------------------------------------------
def lct_forward(feature_bdthw, params, *, crop, spatial):
    B, D, T, H, W = feature_bdthw.shape
    assert T == crop and H == W == spatial
    BD = B * D
    exponent = 4 if params['material'] == 'diffuse' else 2

    # Fold gridz**p into the resampling matrix columns:
    #   mtx @ (diag(gz^p) @ x) == (mtx * gz^p[None, :]) @ x
    mtx_scaled = params['mtx'] * (params['gridz'] ** exponent)[None, :]

    # Pallas kernel 1: scaled resampling matmul.
    x = feature_bdthw.astype(jnp.float32).reshape(BD, T, H * W)
    tmp = resample_matmul(mtx_scaled, x)                          # (BD, T, HW)

    # Zero-pad into (BD, 2T, 2H, 2W) -- single XLA pad.
    # TODO(synk): fold this pad into the Pallas output BlockSpec when W % 128 == 0
    # (small spatial grids would require sub-128 masked lane stores + a relayout,
    # which is not worth the risk for a ~10-20% pre-FFT-stage win).
    datapad = jnp.pad(tmp.reshape(BD, T, H, W),
                      ((0, 0), (0, T), (0, H), (0, W)))

    # torch.fft.fftn with no dims => FFT over ALL axes (incl. the BD axis).
    datafre = jnp.fft.fftn(datapad)                               # complex64

    # Frequency filter as ONE fused XLA elementwise op (review item): reads the
    # complex spectrum once and writes one real array -- no dr/di HBM round trip.
    # wp/wm fold the learnable weights, the inverse PSF and the 0.5 of the
    # collapsed size-2 ifft along the reference's stacked real/imag axis, so
    #   s = dr*wp + di*wm == ifft_{last axis}(stack([re_real, re_imag]))[..., 0]
    # and the reference's 5-D ifftn reduces to one 4-D ifftn of `s`.
    w1 = params['learn_w'][0] + params['invpsf_real'][0]          # (2T, 2H, 2W)
    w2 = params['learn_w'][1] + params['invpsf_imag'][0]
    wp = 0.5 * (w1 + w2)
    wm = 0.5 * (w1 - w2)
    s = jnp.real(datafre) * wp + jnp.imag(datafre) * wm           # (BD,2T,2H,2W) f32

    re = jnp.fft.ifftn(s)                                         # 4-D ifftn
    vol = jnp.real(re)[:, :T, :H, :W].reshape(BD, T, H * W)

    # Pallas kernel 2: mtxi @ volume (same kernel, different matrix).
    out = resample_matmul(params['mtxi'], vol)                    # (BD, T, HW)
    return out.reshape(B, D, T, H, W)


# Pure-JAX reference (mirrors the PyTorch forward line by line) for validation.
def lct_forward_ref(feature_bdthw, params, *, crop, spatial):
    B, D, T, H, W = feature_bdthw.shape
    BD = B * D
    exponent = 4 if params['material'] == 'diffuse' else 2
    gz = params['gridz'].reshape(1, T, 1, 1)
    data = feature_bdthw.astype(jnp.float32).reshape(BD, T, H, W) * gz ** exponent
    right = data.reshape(BD, T, H * W)
    tmp = jnp.matmul(params['mtx'], right, precision=lax.Precision.HIGHEST)
    datapad = jnp.zeros((BD, 2 * T, 2 * H, 2 * W), jnp.float32)
    datapad = datapad.at[:, :T, :H, :W].set(tmp.reshape(BD, T, H, W))
    datafre = jnp.fft.fftn(datapad)
    dr, di = jnp.real(datafre), jnp.imag(datafre)
    w1 = params['learn_w'][0] + params['invpsf_real'][0]
    w2 = params['learn_w'][1] + params['invpsf_imag'][0]
    re_real = dr * w1 - di * w2
    re_imag = dr * w2 + di * w1
    refre = jnp.stack([re_real, re_imag], axis=4)
    re = jnp.fft.ifftn(refre)
    vol = jnp.real(re[:, :T, :H, :W, 0]).reshape(BD, T, H * W)
    tmp = jnp.matmul(params['mtxi'], vol, precision=lax.Precision.HIGHEST)
    return tmp.reshape(B, D, T, H, W)


if __name__ == "__main__":
    # Small shapes consistent with the module: crop must be a power of 2,
    # H == W == spatial_grid, T == crop.
    B, D, T, H, W = 2, 2, 16, 16, 16
    params = make_lct_params(spatial=H, crop=T, bin_len=0.01, wall_size=2.0,
                             method='lct', material='diffuse')

    key = jax.random.PRNGKey(0)
    feature = jax.random.normal(key, (B, D, T, H, W), dtype=jnp.float32)

    fwd = jax.jit(lambda f: lct_forward(f, params, crop=T, spatial=H))
    out = jax.block_until_ready(fwd(feature))

    ref = jax.block_until_ready(lct_forward_ref(feature, params, crop=T, spatial=H))
    assert out.shape == (B, D, T, H, W) and out.dtype == jnp.float32
    assert bool(jnp.all(jnp.isfinite(out)))
    err = float(jnp.max(jnp.abs(out - ref)))
    scale = float(jnp.max(jnp.abs(ref))) + 1e-12
    assert err <= 1e-3 * scale + 1e-6, f"mismatch: max_abs_err={err}, ref_scale={scale}"

    print("KERNEL_OK")
</pallas_src>

<mosaic_0001>
module attributes {stable_mosaic.version = 11 : i64} {
  func.func @_resample_kernel(%arg0: i32, %arg1: i32, %arg2: memref<16x16xf32, #tpu.memory_space<vmem>>, %arg3: memref<1x16x256xf32, #tpu.memory_space<vmem>>, %arg4: memref<1x16x256xf32, #tpu.memory_space<vmem>>) attributes {dimension_semantics = [#tpu.dimension_semantics<parallel>, #tpu.dimension_semantics<parallel>], iteration_bounds = array<i64: 4, 1>, scalar_prefetch = 0 : i64, scratch_operands = 0 : i64, tpu.core_type = #tpu.core_type<tc>, window_params = [{pipeline_mode = #tpu.pipeline_mode<synchronous>, transform_indices = @transform_0, window_bounds = array<i64: 16, 16>}, {transform_indices = @transform_1, window_bounds = array<i64: 1, 16, 256>}, {transform_indices = @transform_2, window_bounds = array<i64: 1, 16, 256>}]} {
    %c0 = arith.constant 0 : index
    %c0_0 = arith.constant 0 : index
    %0 = vector.load %arg2[%c0, %c0_0] : memref<16x16xf32, #tpu.memory_space<vmem>>, vector<16x16xf32>
    %c0_1 = arith.constant 0 : index
    %c0_2 = arith.constant 0 : index
    %c0_3 = arith.constant 0 : index
    %1 = vector.load %arg3[%c0_1, %c0_2, %c0_3] : memref<1x16x256xf32, #tpu.memory_space<vmem>>, vector<1x16x256xf32>
    %2 = vector.shape_cast %1 : vector<1x16x256xf32> to vector<16x256xf32>
    %cst = arith.constant dense<0.000000e+00> : vector<16x256xf32>
    %3 = tpu.matmul %0, %2, %cst {dimension_numbers = #tpu.dot_dimension_numbers<[1], [0], [0], [1], [0, 0, 1, 1], [], []>} : vector<16x16xf32>, vector<16x256xf32>, vector<16x256xf32> -> vector<16x256xf32>
    %c0_4 = arith.constant 0 : index
    %c0_5 = arith.constant 0 : index
    %c0_6 = arith.constant 0 : index
    %4 = vector.load %arg4[%c0_4, %c0_5, %c0_6] : memref<1x16x256xf32, #tpu.memory_space<vmem>>, vector<1x16x256xf32>
    %5 = vector.shape_cast %4 : vector<1x16x256xf32> to vector<16x256xf32>
    %6 = vector.shape_cast %3 : vector<16x256xf32> to vector<1x16x256xf32>
    tpu.vector_store %arg4[%c0_4, %c0_5, %c0_6], %6 {strides = array<i32>} : memref<1x16x256xf32, #tpu.memory_space<vmem>>, vector<1x16x256xf32>,
    return
  }
  func.func @transform_0(%arg0: i32, %arg1: i32) -> (i32, i32) {
    %c0_i32 = arith.constant 0 : i32
    %c0_i32_0 = arith.constant 0 : i32
    %c0_i32_1 = arith.constant 0 : i32
    return %c0_i32, %c0_i32_0 : i32, i32
  }
  func.func @transform_1(%arg0: i32, %arg1: i32) -> (i32, i32, i32) {
    %c0_i32 = arith.constant 0 : i32
    %c0_i32_0 = arith.constant 0 : i32
    return %arg0, %c0_i32, %arg1 : i32, i32, i32
  }
  func.func @transform_2(%arg0: i32, %arg1: i32) -> (i32, i32, i32) {
    %c0_i32 = arith.constant 0 : i32
    %c0_i32_0 = arith.constant 0 : i32
    return %arg0, %c0_i32, %arg1 : i32, i32, i32
  }
}

module attributes {stable_mosaic.version = 11 : i64} {
  func.func @_resample_kernel(%arg0: i32, %arg1: i32, %arg2: memref<16x16xf32, #tpu.memory_space<vmem>>, %arg3: memref<1x16x256xf32, #tpu.memory_space<vmem>>, %arg4: memref<1x16x256xf32, #tpu.memory_space<vmem>>) attributes {dimension_semantics = [#tpu.dimension_semantics<parallel>, #tpu.dimension_semantics<parallel>], iteration_bounds = array<i64: 4, 1>, scalar_prefetch = 0 : i64, scratch_operands = 0 : i64, tpu.core_type = #tpu.core_type<tc>, window_params = [{pipeline_mode = #tpu.pipeline_mode<synchronous>, transform_indices = @transform_0, window_bounds = array<i64: 16, 16>}, {transform_indices = @transform_1, window_bounds = array<i64: 1, 16, 256>}, {transform_indices = @transform_2, window_bounds = array<i64: 1, 16, 256>}]} {
    %c0 = arith.constant 0 : index
    %c0_0 = arith.constant 0 : index
    %0 = vector.load %arg2[%c0, %c0_0] : memref<16x16xf32, #tpu.memory_space<vmem>>, vector<16x16xf32>
    %c0_1 = arith.constant 0 : index
    %c0_2 = arith.constant 0 : index
    %c0_3 = arith.constant 0 : index
    %1 = vector.load %arg3[%c0_1, %c0_2, %c0_3] : memref<1x16x256xf32, #tpu.memory_space<vmem>>, vector<1x16x256xf32>
    %2 = vector.shape_cast %1 : vector<1x16x256xf32> to vector<16x256xf32>
    %cst = arith.constant dense<0.000000e+00> : vector<16x256xf32>
    %3 = tpu.matmul %0, %2, %cst {dimension_numbers = #tpu.dot_dimension_numbers<[1], [0], [0], [1], [0, 0, 1, 1], [], []>} : vector<16x16xf32>, vector<16x256xf32>, vector<16x256xf32> -> vector<16x256xf32>
    %c0_4 = arith.constant 0 : index
    %c0_5 = arith.constant 0 : index
    %c0_6 = arith.constant 0 : index
    %4 = vector.load %arg4[%c0_4, %c0_5, %c0_6] : memref<1x16x256xf32, #tpu.memory_space<vmem>>, vector<1x16x256xf32>
    %5 = vector.shape_cast %4 : vector<1x16x256xf32> to vector<16x256xf32>
    %6 = vector.shape_cast %3 : vector<16x256xf32> to vector<1x16x256xf32>
    tpu.vector_store %arg4[%c0_4, %c0_5, %c0_6], %6 {strides = array<i32>} : memref<1x16x256xf32, #tpu.memory_space<vmem>>, vector<1x16x256xf32>,
    return
  }
  func.func @transform_0(%arg0: i32, %arg1: i32) -> (i32, i32) {
    %c0_i32 = arith.constant 0 : i32
    %c0_i32_0 = arith.constant 0 : i32
    %c0_i32_1 = arith.constant 0 : i32
    return %c0_i32, %c0_i32_0 : i32, i32
  }
  func.func @transform_1(%arg0: i32, %arg1: i32) -> (i32, i32, i32) {
    %c0_i32 = arith.constant 0 : i32
    %c0_i32_0 = arith.constant 0 : i32
    return %arg0, %c0_i32, %arg1 : i32, i32, i32
  }
  func.func @transform_2(%arg0: i32, %arg1: i32) -> (i32, i32, i32) {
    %c0_i32 = arith.constant 0 : i32
    %c0_i32_0 = arith.constant 0 : i32
    return %arg0, %c0_i32, %arg1 : i32, i32, i32
  }
}

</mosaic_0001>

<llo_original>
// kernel: _lambda_.2
$region0: #{_lambda_.2}
  #allocation0 [shape = 'u32[]', space=smem, size = 0x4, offset = 0x4, fixed_abs, tag = 'smem constant byte address 0x4 - core index']
  #allocation1 [shape = 'u32[72,128]{1,0:T(1,128)}', space=vmem, size = 0x9000, scoped, tag = 'internal scratch']
  %s0 = inlined_call_operand.hbm [shape: f32[16,16], index: 0, kind: input, shape index: {}]
  %s1 = inlined_call_operand.vmem [shape: f32[4,16,256], index: 1, kind: input, shape index: {}]
  %s2 = inlined_call_operand.vmem [shape: f32[4,16,256], index: 2, kind: output, shape index: {}]
  %s3 = sld [smem:[#allocation0]]
  $region45: #{_lambda_.2} parent=0
    _
  %s5 = ssub.s32 1, %s3
  %s6 = scalar_select 0, %s5, %s3
  $region1: #{_lambda_.2} parent=0
    #allocation2 [shape = 'u8[8192]{0}', space=vmem, size = 0x2000, scoped, tag = 'input window, operand 0, single buffered']
    #allocation3 [shape = 's32[2]{0}', space=sflag, size = 0x8, scoped, tag = 'scoped memory for _lambda_.2']
    %7 = vsyncpa [#allocation3], 0
    loop: start=0, step=1, limit=6
    $region2: #{_lambda_.2} parent=1 // loop_pre_header
      _
    $region3: #{_lambda_.2} parent=1 // loop_header
      %s9 = sphi 0, %s13
      %p10 = scmp.ge.s32.totalorder %s9, 6
      %s16 = sphi 0, %s28
      %s17 = sphi 0, %s24
      %s18 = sphi 0, %s16
      %s19 = sphi 0, %s17
      %s20 = sphi 0, %s18
      %s21 = sphi 0, %s19
      %s29 = sphi 0, %s29
      %s31 = sphi 0, %s29
      %s32 = sphi 0, %s31
      %s46 = sphi 0, %s32
      %s54 = sphi 0, %s56
      %s57 = sphi 0, %s54
      %s58 = sphi 0, %s57
      %s74 = sphi 0, %s58
      %s82 = sphi 0, %s84
      %s85 = sphi 0, %s82
      %s86 = sphi 0, %s85
      %s102 = sphi 0, %s86
    $region4: #{_lambda_.2} parent=1 // loop_header_branch
      %12 = sbr.rel (%p10) target = $region8
    $region5: #{_lambda_.2} parent=1 // loop_body
      %s14 = ssub.s32 %s9, 1
      %s15 = ssub.s32 %s9, 2
      %s22 = sadd.s32 1, %s17
      %p23 = scmp.ge.s32.totalorder %s22, 1
      %s24 = scalar_select %p23, 0, %s22
      %s25 = sadd.s32 1, %s16
      %s26 = scalar_select %p23, %s25, %s16
      %p27 = scmp.ge.s32.totalorder %s26, 4
      %s28 = scalar_select %p27, 0, %s26
      %s30 = sadd.s32 %s29, 1
      %p33 = scmp.eq.s32.totalorder %s9, 3
      %p34 = scmp.ne.s32.totalorder %s29, %s31
      %p35 = scmp.eq.s32.totalorder %s9, 0
      %p36 = por %p34, %p35
      %p37 = scmp.ne.s32.totalorder %s29, %s31
      %p38 = scmp.eq.s32.totalorder %s14, 3
      %p39 = por %p37, %p38
      %p40 = scmp.ne.s32.totalorder %s31, %s32
      %p41 = scmp.eq.s32.totalorder %s14, 0
      %p42 = por %p40, %p41
      %p43 = scmp.ne.s32.totalorder %s31, %s32
      %p44 = scmp.eq.s32.totalorder %s15, 3
      %p45 = por %p43, %p44
      %p47 = scmp.ne.s32.totalorder %s32, %s46
      %p48 = scmp.eq.s32.totalorder %s15, 0
      %p49 = por %p47, %p48
      %s50 = ssub.s32 %s16, %s28
      %s51 = ssub.s32 %s17, %s24
      %s52 = sor.u32 %s50, %s51
      %p53 = scmp.eq.s32.totalorder %s52, 0
      %s55 = sadd.s32 %s54, 1
      %s56 = scalar_select %p53, %s54, %s55
      %p59 = pneg %p53
      %p60 = scmp.eq.s32.totalorder %s9, 3
      %p61 = por %p59, %p60
      %p62 = scmp.ne.s32.totalorder %s54, %s57
      %p63 = scmp.eq.s32.totalorder %s9, 0
      %p64 = por %p62, %p63
      %p65 = scmp.ne.s32.totalorder %s54, %s57
      %p66 = scmp.eq.s32.totalorder %s14, 3
      %p67 = por %p65, %p66
      %p68 = scmp.ne.s32.totalorder %s57, %s58
      %p69 = scmp.eq.s32.totalorder %s14, 0
      %p70 = por %p68, %p69
      %p71 = scmp.ne.s32.totalorder %s57, %s58
      %p72 = scmp.eq.s32.totalorder %s15, 3
      %p73 = por %p71, %p72
      %p75 = scmp.ne.s32.totalorder %s58, %s74
      %p76 = scmp.eq.s32.totalorder %s15, 0
      %p77 = por %p75, %p76
      %s78 = ssub.s32 %s16, %s28
      %s79 = ssub.s32 %s17, %s24
      %s80 = sor.u32 %s78, %s79
      %p81 = scmp.eq.s32.totalorder %s80, 0
      %s83 = sadd.s32 %s82, 1
      %s84 = scalar_select %p81, %s82, %s83
      %p87 = pneg %p81
      %p88 = scmp.eq.s32.totalorder %s9, 3
      %p89 = por %p87, %p88
      %p90 = scmp.ne.s32.totalorder %s82, %s85
      %p91 = scmp.eq.s32.totalorder %s9, 0
      %p92 = por %p90, %p91
      %p93 = scmp.ne.s32.totalorder %s82, %s85
      %p94 = scmp.eq.s32.totalorder %s14, 3
      %p95 = por %p93, %p94
      %p96 = scmp.ne.s32.totalorder %s85, %s86
      %p97 = scmp.eq.s32.totalorder %s14, 0
      %p98 = por %p96, %p97
      %p99 = scmp.ne.s32.totalorder %s85, %s86
      %p100 = scmp.eq.s32.totalorder %s15, 3
      %p101 = por %p99, %p100
      %p103 = scmp.ne.s32.totalorder %s86, %s102
      %p104 = scmp.eq.s32.totalorder %s15, 0
      %p105 = por %p103, %p104
      %p106 = scmp.le.s32.totalorder 1, %s9
      %p107 = scmp.lt.s32.totalorder %s9, 5
      %p108 = pnand %p106, %p107
      %p109 = pneg %p108
      // Predicated region
      $region9: #{_lambda_.2} parent=5 // pred_check
        _
      $region10: #{_lambda_.2} parent=5 // pred_check_branch
        %111 = sbr.rel (%p108) target = $region12
      $region11: #{_lambda_.2} parent=5 // pred_region
        %s112 = ssub.s32 %s9, 1
        // Predicated region
        $region13: #{_lambda_.2} parent=11 // pred_check
          %p113 = pneg %p42
        $region14: #{_lambda_.2} parent=11 // pred_check_branch
          %115 = sbr.rel (%p113) target = $region16
        $region15: #{_lambda_.2} parent=11 // pred_region
          %117 = vsyncadd [#allocation3], 0
          %s118 = sshll.u32 %s0, 4
          %s119 = int_to_ptr.hbm [resolvable:$true] %s118
          %s120 = sshll.u32 [#allocation2], 4
          %s121 = int_to_ptr.vmem [resolvable:$true] %s120
          %126 = dma.hbm_to_vmem [thread:$0]  %s119, 256, %s121, [#allocation3], 128, 128, 8
        $region16: #{_lambda_.2} parent=11 // pred_fallthru
          _
      $region12: #{_lambda_.2} parent=5 // pred_fallthru
        _
      %p127 = scmp.lt.s32.totalorder %s9, 4
      // Predicated region
      $region17: #{_lambda_.2} parent=5 // pred_check
        %p128 = pneg %p127
      $region18: #{_lambda_.2} parent=5 // pred_check_branch
        %130 = sbr.rel (%p128) target = $region20
      $region19: #{_lambda_.2} parent=5 // pred_region
        // Predicated region
        $region21: #{_lambda_.2} parent=19 // pred_check
          %p131 = pneg %p64
        $region22: #{_lambda_.2} parent=19 // pred_check_branch
          %133 = sbr.rel (%p131) target = $region24
        $region23: #{_lambda_.2} parent=19 // pred_region
          %s134 = smul.u32 2, %s17
          %p135 = scmp.lt.s32.totalorder %s16, 3
          %s136 = scalar_select %p135, %s16, 3
          %p137 = scmp.lt.s32.totalorder %s134, 1
          %s138 = scalar_select %p137, %s134, 1
          %s139 = smul.addr %s136, 4
          %s140 = sadd.s32 %s138, %s139
          %s141 = smul.addr %s140, 8
          %s142 = scalar_lea.vmem %s1, %s141
          %s143 = smul.u32 2, %s17
        $region24: #{_lambda_.2} parent=19 // pred_fallthru
          _
      $region20: #{_lambda_.2} parent=5 // pred_fallthru
        _
      %p144 = scmp.le.s32.totalorder 1, %s9
      %p145 = scmp.lt.s32.totalorder %s9, 5
      %p146 = pnand %p144, %p145
      %p147 = pneg %p146
      // Predicated region
      $region25: #{_lambda_.2} parent=5 // pred_check
        _
      $region26: #{_lambda_.2} parent=5 // pred_check_branch
        %149 = sbr.rel (%p146) target = $region28
      $region27: #{_lambda_.2} parent=5 // pred_region
        %s150 = ssub.s32 %s9, 1
        // Predicated region
        $region29: #{_lambda_.2} parent=27 // pred_check
          %p151 = pneg %p42
        $region30: #{_lambda_.2} parent=27 // pred_check_branch
          %153 = sbr.rel (%p151) target = $region32
        $region31: #{_lambda_.2} parent=27 // pred_region
          %155 = dma.done [#allocation3], 256
        $region32: #{_lambda_.2} parent=27 // pred_fallthru
          _
        %p156 = pneg %p42
        %p157 = pneg %p39
        %s158 = smul.u32 2, %s19
        %p159 = scmp.lt.s32.totalorder %s18, 3
        %s160 = scalar_select %p159, %s18, 3
        %p161 = scmp.lt.s32.totalorder %s158, 1
        %s162 = scalar_select %p161, %s158, 1
        %s163 = smul.addr %s160, 4
        %s164 = sadd.s32 %s162, %s163
        %s165 = smul.addr %s164, 8
        %s166 = scalar_lea.vmem %s1, %s165
        %p167 = pneg %p70
        %p168 = pneg %p67
        %p169 = pneg %p98
        %p170 = pneg %p95
        %s171 = smul.u32 2, %s19
        %p172 = scmp.lt.s32.totalorder %s18, 3
        %s173 = scalar_select %p172, %s18, 3
        %p174 = scmp.lt.s32.totalorder %s171, 1
        %s175 = scalar_select %p174, %s171, 1
        %s176 = smul.addr %s173, 4
        %s177 = sadd.s32 %s175, %s176
        %s178 = smul.addr %s177, 8
        %s179 = scalar_lea.vmem %s2, %s178
        %s180 = smul.u32 2, %s19
        %p181 = scmp.lt.s32.totalorder %s18, 3
        %s182 = scalar_select %p181, %s18, 3
        %p183 = scmp.lt.s32.totalorder %s180, 1
        %s184 = scalar_select %p183, %s180, 1
        %s185 = smul.addr %s182, 4
        %s186 = sadd.s32 %s184, %s185
        %s187 = smul.addr %s186, 8
        %s188 = scalar_lea.vmem %s1, %s187
        %s189 = smul.u32 2, %s19
        %s190 = smul.u32 2, %s19
        %p191 = scmp.lt.s32.totalorder %s18, 3
        %s192 = scalar_select %p191, %s18, 3
        %p193 = scmp.lt.s32.totalorder %s190, 1
        %s194 = scalar_select %p193, %s190, 1
        %s195 = smul.addr %s192, 4
        %s196 = sadd.s32 %s194, %s195
        %s197 = smul.addr %s196, 8
        %s198 = scalar_lea.vmem %s2, %s197
        %s199 = smul.u32 2, %s19
        %v200 = vld [vmem:[#allocation2] sm:$0xff]
        %v201 = vld [vmem:[#allocation2 + $0x8] sm:$0xff]
        %v202 = vld [vmem:[%s188] sm:$0xff]
        %v203 = vld [vmem:[%s188 + $0x8] sm:$0xff]
        %v204 = vld [vmem:[%s188 + $0x10] sm:$0xff]
        %v205 = vld [vmem:[%s188 + $0x18] sm:$0xff]
        %vm206 = vcmask 130048
        %v208 = vsel %vm206, %v200, 0
        %v211 = vsel %vm206, %v201, 0
        %213 = vmatpush.msra.mxu0 0.0
        %214 = vmatpush.msra.mxu0 0.0
        %215 = vmatpush.msra.mxu0 0.0
        %216 = vmatpush.msra.mxu0 0.0
        %217 = vmatpush.msra.mxu0 0.0
        %218 = vmatpush.msra.mxu0 0.0
        %219 = vmatpush.msra.mxu0 0.0
        %220 = vmatpush.msra.mxu0 0.0
        %221 = vmatpush.msra.mxu0 0.0
        %222 = vmatpush.msra.mxu0 0.0
        %223 = vmatpush.msra.mxu0 0.0
        %224 = vmatpush.msra.mxu0 0.0
        %225 = vmatpush.msra.mxu0 0.0
        %226 = vmatpush.msra.mxu0 0.0
        %227 = vmatpush.msra.mxu0 %v204
        %228 = vmatpush.msra.mxu0 %v202
        %229 = vmatmul.f32.gmra.mxu0 %v208
        %v230 = vpop.f32.mrf.mxu0
        %v231 = vadd.f32 0.0, %v230
        %232 = vmatmul.f32.gmra.mxu0 %v211
        %v233 = vpop.f32.mrf.mxu0
        %v234 = vadd.f32 0.0, %v233
        %235 = vdwg.mxu0
        %236 = vmatpush.msra.mxu0 0.0
        %237 = vmatpush.msra.mxu0 0.0
        %238 = vmatpush.msra.mxu0 0.0
        %239 = vmatpush.msra.mxu0 0.0
        %240 = vmatpush.msra.mxu0 0.0
        %241 = vmatpush.msra.mxu0 0.0
        %242 = vmatpush.msra.mxu0 0.0
        %243 = vmatpush.msra.mxu0 0.0
        %244 = vmatpush.msra.mxu0 0.0
        %245 = vmatpush.msra.mxu0 0.0
        %246 = vmatpush.msra.mxu0 0.0
        %247 = vmatpush.msra.mxu0 0.0
        %248 = vmatpush.msra.mxu0 0.0
        %249 = vmatpush.msra.mxu0 0.0
        %250 = vmatpush.msra.mxu0 %v205
        %251 = vmatpush.msra.mxu0 %v203
        %252 = vmatmul.f32.gmra.mxu0 %v208
        %v253 = vpop.f32.mrf.mxu0
        %v254 = vadd.f32 0.0, %v253
        %255 = vmatmul.f32.gmra.mxu0 %v211
        %v256 = vpop.f32.mrf.mxu0
        %v257 = vadd.f32 0.0, %v256
        %258 = vdwg.mxu0
        %259 = vst [vmem:[%s198] sm:$0xff] %v231
        %260 = vst [vmem:[%s198 + $0x8] sm:$0xff] %v254
        %261 = vst [vmem:[%s198 + $0x10] sm:$0xff] %v234
        %262 = vst [vmem:[%s198 + $0x18] sm:$0xff] %v257
        %s263 = smul.u32 2, %s19
        %p264 = scmp.lt.s32.totalorder %s18, 3
        %s265 = scalar_select %p264, %s18, 3
        %p266 = scmp.lt.s32.totalorder %s263, 1
        %s267 = scalar_select %p266, %s263, 1
        %s268 = smul.addr %s265, 4
        %s269 = sadd.s32 %s267, %s268
        %s270 = smul.addr %s269, 8
        %s271 = scalar_lea.vmem %s2, %s270
        // Predicated region
        $region33: #{_lambda_.2} parent=27 // pred_check
          %p272 = pneg %p95
        $region34: #{_lambda_.2} parent=27 // pred_check_branch
          %274 = sbr.rel (%p272) target = $region36
        $region35: #{_lambda_.2} parent=27 // pred_region
          %s275 = smul.u32 2, %s19
        $region36: #{_lambda_.2} parent=27 // pred_fallthru
          _
      $region28: #{_lambda_.2} parent=5 // pred_fallthru
        _
      %p276 = scmp.le.s32.totalorder 2, %s9
      // Predicated region
      $region37: #{_lambda_.2} parent=5 // pred_check
        %p277 = pneg %p276
      $region38: #{_lambda_.2} parent=5 // pred_check_branch
        %279 = sbr.rel (%p277) target = $region40
      $region39: #{_lambda_.2} parent=5 // pred_region
        %s280 = ssub.s32 %s9, 2
        // Predicated region
        $region41: #{_lambda_.2} parent=39 // pred_check
          %p281 = pneg %p101
        $region42: #{_lambda_.2} parent=39 // pred_check_branch
          %283 = sbr.rel (%p281) target = $region44
        $region43: #{_lambda_.2} parent=39 // pred_region
          %s284 = smul.u32 2, %s21
          %p285 = scmp.lt.s32.totalorder %s20, 3
          %s286 = scalar_select %p285, %s20, 3
          %p287 = scmp.lt.s32.totalorder %s284, 1
          %s288 = scalar_select %p287, %s284, 1
          %s289 = smul.addr %s286, 4
          %s290 = sadd.s32 %s288, %s289
          %s291 = smul.addr %s290, 8
          %s292 = scalar_lea.vmem %s2, %s291
        $region44: #{_lambda_.2} parent=39 // pred_fallthru
          _
      $region40: #{_lambda_.2} parent=5 // pred_fallthru
        _
    $region6: #{_lambda_.2} parent=1 // loop_footer
      %s13 = sadd.s32 1, %s9
    $region7: #{_lambda_.2} parent=1 // loop_footer_branch
      %8 = sbr.rel target = $region3
    $region8: #{_lambda_.2} parent=1 // loop_exit
      _
    %293 = vsyncpa [#allocation3], 1
    %s294 = scalar_lea.sflag [#allocation3], 1
    %295 = vsyncpa %s294, 1

// kernel: _lambda_.3
$region0: #{_lambda_.3}
  #allocation0 [shape = 'u32[]', space=smem, size = 0x4, offset = 0x4, fixed_abs, tag = 'smem constant byte address 0x4 - core index']
  #allocation1 [shape = 'u32[72,128]{1,0:T(1,128)}', space=vmem, size = 0x9000, scoped, tag = 'internal scratch']
  %s0 = inlined_call_operand.vmem [shape: f32[16,16], index: 0, kind: input, shape index: {}]
  %s1 = inlined_call_operand.vmem [shape: f32[4,16,256], index: 1, kind: input, shape index: {}]
  %s2 = inlined_call_operand.vmem [shape: f32[4,16,256], index: 2, kind: output, shape index: {}]
  %s3 = sld [smem:[#allocation0]]
  $region41: #{_lambda_.3} parent=0
    _
  %s5 = ssub.s32 1, %s3
  %s6 = scalar_select 0, %s5, %s3
  loop: start=0, step=1, limit=6
  $region2: #{_lambda_.3} parent=0 // loop_pre_header
    _
  $region3: #{_lambda_.3} parent=0 // loop_header
    %s8 = sphi 0, %s12
    %p9 = scmp.ge.s32.totalorder %s8, 6
    %s15 = sphi 0, %s27
    %s16 = sphi 0, %s23
    %s17 = sphi 0, %s15
    %s18 = sphi 0, %s16
    %s19 = sphi 0, %s17
    %s20 = sphi 0, %s18
    %s28 = sphi 0, %s28
    %s30 = sphi 0, %s28
    %s31 = sphi 0, %s30
    %s45 = sphi 0, %s31
    %s53 = sphi 0, %s55
    %s56 = sphi 0, %s53
    %s57 = sphi 0, %s56
    %s73 = sphi 0, %s57
    %s81 = sphi 0, %s83
    %s84 = sphi 0, %s81
    %s85 = sphi 0, %s84
    %s101 = sphi 0, %s85
  $region4: #{_lambda_.3} parent=0 // loop_header_branch
    %11 = sbr.rel (%p9) target = $region8
  $region5: #{_lambda_.3} parent=0 // loop_body
    %s13 = ssub.s32 %s8, 1
    %s14 = ssub.s32 %s8, 2
    %s21 = sadd.s32 1, %s16
    %p22 = scmp.ge.s32.totalorder %s21, 1
    %s23 = scalar_select %p22, 0, %s21
    %s24 = sadd.s32 1, %s15
    %s25 = scalar_select %p22, %s24, %s15
    %p26 = scmp.ge.s32.totalorder %s25, 4
    %s27 = scalar_select %p26, 0, %s25
    %s29 = sadd.s32 %s28, 1
    %p32 = scmp.eq.s32.totalorder %s8, 3
    %p33 = scmp.ne.s32.totalorder %s28, %s30
    %p34 = scmp.eq.s32.totalorder %s8, 0
    %p35 = por %p33, %p34
    %p36 = scmp.ne.s32.totalorder %s28, %s30
    %p37 = scmp.eq.s32.totalorder %s13, 3
    %p38 = por %p36, %p37
    %p39 = scmp.ne.s32.totalorder %s30, %s31
    %p40 = scmp.eq.s32.totalorder %s13, 0
    %p41 = por %p39, %p40
    %p42 = scmp.ne.s32.totalorder %s30, %s31
    %p43 = scmp.eq.s32.totalorder %s14, 3
    %p44 = por %p42, %p43
    %p46 = scmp.ne.s32.totalorder %s31, %s45
    %p47 = scmp.eq.s32.totalorder %s14, 0
    %p48 = por %p46, %p47
    %s49 = ssub.s32 %s15, %s27
    %s50 = ssub.s32 %s16, %s23
    %s51 = sor.u32 %s49, %s50
    %p52 = scmp.eq.s32.totalorder %s51, 0
    %s54 = sadd.s32 %s53, 1
    %s55 = scalar_select %p52, %s53, %s54
    %p58 = pneg %p52
    %p59 = scmp.eq.s32.totalorder %s8, 3
    %p60 = por %p58, %p59
    %p61 = scmp.ne.s32.totalorder %s53, %s56
    %p62 = scmp.eq.s32.totalorder %s8, 0
    %p63 = por %p61, %p62
    %p64 = scmp.ne.s32.totalorder %s53, %s56
    %p65 = scmp.eq.s32.totalorder %s13, 3
    %p66 = por %p64, %p65
    %p67 = scmp.ne.s32.totalorder %s56, %s57
    %p68 = scmp.eq.s32.totalorder %s13, 0
    %p69 = por %p67, %p68
    %p70 = scmp.ne.s32.totalorder %s56, %s57
    %p71 = scmp.eq.s32.totalorder %s14, 3
    %p72 = por %p70, %p71
    %p74 = scmp.ne.s32.totalorder %s57, %s73
    %p75 = scmp.eq.s32.totalorder %s14, 0
    %p76 = por %p74, %p75
    %s77 = ssub.s32 %s15, %s27
    %s78 = ssub.s32 %s16, %s23
    %s79 = sor.u32 %s77, %s78
    %p80 = scmp.eq.s32.totalorder %s79, 0
    %s82 = sadd.s32 %s81, 1
    %s83 = scalar_select %p80, %s81, %s82
    %p86 = pneg %p80
    %p87 = scmp.eq.s32.totalorder %s8, 3
    %p88 = por %p86, %p87
    %p89 = scmp.ne.s32.totalorder %s81, %s84
    %p90 = scmp.eq.s32.totalorder %s8, 0
    %p91 = por %p89, %p90
    %p92 = scmp.ne.s32.totalorder %s81, %s84
    %p93 = scmp.eq.s32.totalorder %s13, 3
    %p94 = por %p92, %p93
    %p95 = scmp.ne.s32.totalorder %s84, %s85
    %p96 = scmp.eq.s32.totalorder %s13, 0
    %p97 = por %p95, %p96
    %p98 = scmp.ne.s32.totalorder %s84, %s85
    %p99 = scmp.eq.s32.totalorder %s14, 3
    %p100 = por %p98, %p99
    %p102 = scmp.ne.s32.totalorder %s85, %s101
    %p103 = scmp.eq.s32.totalorder %s14, 0
    %p104 = por %p102, %p103
    %p105 = scmp.le.s32.totalorder 1, %s8
    %p106 = scmp.lt.s32.totalorder %s8, 5
    %p107 = pnand %p105, %p106
    %p108 = pneg %p107
    // Predicated region
    $region9: #{_lambda_.3} parent=5 // pred_check
      _
    $region10: #{_lambda_.3} parent=5 // pred_check_branch
      %110 = sbr.rel (%p107) target = $region12
    $region11: #{_lambda_.3} parent=5 // pred_region
      %s111 = ssub.s32 %s8, 1
      // Predicated region
      $region13: #{_lambda_.3} parent=11 // pred_check
        %p112 = pneg %p41
      $region14: #{_lambda_.3} parent=11 // pred_check_branch
        %114 = sbr.rel (%p112) target = $region16
      $region15: #{_lambda_.3} parent=11 // pred_region
        _
      $region16: #{_lambda_.3} parent=11 // pred_fallthru
        _
    $region12: #{_lambda_.3} parent=5 // pred_fallthru
      _
    %p115 = scmp.lt.s32.totalorder %s8, 4
    // Predicated region
    $region17: #{_lambda_.3} parent=5 // pred_check
      %p116 = pneg %p115
    $region18: #{_lambda_.3} parent=5 // pred_check_branch
      %118 = sbr.rel (%p116) target = $region20
    $region19: #{_lambda_.3} parent=5 // pred_region
      // Predicated region
      $region21: #{_lambda_.3} parent=19 // pred_check
        %p119 = pneg %p63
      $region22: #{_lambda_.3} parent=19 // pred_check_branch
        %121 = sbr.rel (%p119) target = $region24
      $region23: #{_lambda_.3} parent=19 // pred_region
        %s122 = smul.u32 2, %s16
        %p123 = scmp.lt.s32.totalorder %s15, 3
        %s124 = scalar_select %p123, %s15, 3
        %p125 = scmp.lt.s32.totalorder %s122, 1
        %s126 = scalar_select %p125, %s122, 1
        %s127 = smul.addr %s124, 4
        %s128 = sadd.s32 %s126, %s127
        %s129 = smul.addr %s128, 8
        %s130 = scalar_lea.vmem %s1, %s129
        %s131 = smul.u32 2, %s16
      $region24: #{_lambda_.3} parent=19 // pred_fallthru
        _
    $region20: #{_lambda_.3} parent=5 // pred_fallthru
      _
    %p132 = scmp.le.s32.totalorder 1, %s8
    %p133 = scmp.lt.s32.totalorder %s8, 5
    %p134 = pnand %p132, %p133
    %p135 = pneg %p134
    // Predicated region
    $region25: #{_lambda_.3} parent=5 // pred_check
      _
    $region26: #{_lambda_.3} parent=5 // pred_check_branch
      %137 = sbr.rel (%p134) target = $region28
    $region27: #{_lambda_.3} parent=5 // pred_region
      %s138 = ssub.s32 %s8, 1
      %p139 = pneg %p41
      %p140 = pneg %p38
      %s141 = smul.u32 2, %s18
      %p142 = scmp.lt.s32.totalorder %s17, 3
      %s143 = scalar_select %p142, %s17, 3
      %p144 = scmp.lt.s32.totalorder %s141, 1
      %s145 = scalar_select %p144, %s141, 1
      %s146 = smul.addr %s143, 4
      %s147 = sadd.s32 %s145, %s146
      %s148 = smul.addr %s147, 8
      %s149 = scalar_lea.vmem %s1, %s148
      %p150 = pneg %p69
      %p151 = pneg %p66
      %p152 = pneg %p97
      %p153 = pneg %p94
      %s154 = smul.u32 2, %s18
      %p155 = scmp.lt.s32.totalorder %s17, 3
      %s156 = scalar_select %p155, %s17, 3
      %p157 = scmp.lt.s32.totalorder %s154, 1
      %s158 = scalar_select %p157, %s154, 1
      %s159 = smul.addr %s156, 4
      %s160 = sadd.s32 %s158, %s159
      %s161 = smul.addr %s160, 8
      %s162 = scalar_lea.vmem %s2, %s161
      %s163 = smul.u32 2, %s18
      %p164 = scmp.lt.s32.totalorder %s17, 3
      %s165 = scalar_select %p164, %s17, 3
      %p166 = scmp.lt.s32.totalorder %s163, 1
      %s167 = scalar_select %p166, %s163, 1
      %s168 = smul.addr %s165, 4
      %s169 = sadd.s32 %s167, %s168
      %s170 = smul.addr %s169, 8
      %s171 = scalar_lea.vmem %s1, %s170
      %s172 = smul.u32 2, %s18
      %s173 = smul.u32 2, %s18
      %p174 = scmp.lt.s32.totalorder %s17, 3
      %s175 = scalar_select %p174, %s17, 3
      %p176 = scmp.lt.s32.totalorder %s173, 1
      %s177 = scalar_select %p176, %s173, 1
      %s178 = smul.addr %s175, 4
      %s179 = sadd.s32 %s177, %s178
      %s180 = smul.addr %s179, 8
      %s181 = scalar_lea.vmem %s2, %s180
      %s182 = smul.u32 2, %s18
      %v183 = vld [vmem:[%s0] sm:$0xff]
      %v184 = vld [vmem:[%s0 + $0x8] sm:$0xff]
      %v185 = vld [vmem:[%s171] sm:$0xff]
      %v186 = vld [vmem:[%s171 + $0x8] sm:$0xff]
      %v187 = vld [vmem:[%s171 + $0x10] sm:$0xff]
      %v188 = vld [vmem:[%s171 + $0x18] sm:$0xff]
      %vm189 = vcmask 130048
      %v191 = vsel %vm189, %v183, 0
      %v194 = vsel %vm189, %v184, 0
      %196 = vmatpush.msra.mxu0 0.0
      %197 = vmatpush.msra.mxu0 0.0
      %198 = vmatpush.msra.mxu0 0.0
      %199 = vmatpush.msra.mxu0 0.0
      %200 = vmatpush.msra.mxu0 0.0
      %201 = vmatpush.msra.mxu0 0.0
      %202 = vmatpush.msra.mxu0 0.0
      %203 = vmatpush.msra.mxu0 0.0
      %204 = vmatpush.msra.mxu0 0.0
      %205 = vmatpush.msra.mxu0 0.0
      %206 = vmatpush.msra.mxu0 0.0
      %207 = vmatpush.msra.mxu0 0.0
      %208 = vmatpush.msra.mxu0 0.0
      %209 = vmatpush.msra.mxu0 0.0
      %210 = vmatpush.msra.mxu0 %v187
      %211 = vmatpush.msra.mxu0 %v185
      %212 = vmatmul.f32.gmra.mxu0 %v191
      %v213 = vpop.f32.mrf.mxu0
      %v214 = vadd.f32 0.0, %v213
      %215 = vmatmul.f32.gmra.mxu0 %v194
      %v216 = vpop.f32.mrf.mxu0
      %v217 = vadd.f32 0.0, %v216
      %218 = vdwg.mxu0
      %219 = vmatpush.msra.mxu0 0.0
      %220 = vmatpush.msra.mxu0 0.0
      %221 = vmatpush.msra.mxu0 0.0
      %222 = vmatpush.msra.mxu0 0.0
      %223 = vmatpush.msra.mxu0 0.0
      %224 = vmatpush.msra.mxu0 0.0
      %225 = vmatpush.msra.mxu0 0.0
      %226 = vmatpush.msra.mxu0 0.0
      %227 = vmatpush.msra.mxu0 0.0
      %228 = vmatpush.msra.mxu0 0.0
      %229 = vmatpush.msra.mxu0 0.0
      %230 = vmatpush.msra.mxu0 0.0
      %231 = vmatpush.msra.mxu0 0.0
      %232 = vmatpush.msra.mxu0 0.0
      %233 = vmatpush.msra.mxu0 %v188
      %234 = vmatpush.msra.mxu0 %v186
      %235 = vmatmul.f32.gmra.mxu0 %v191
      %v236 = vpop.f32.mrf.mxu0
      %v237 = vadd.f32 0.0, %v236
      %238 = vmatmul.f32.gmra.mxu0 %v194
      %v239 = vpop.f32.mrf.mxu0
      %v240 = vadd.f32 0.0, %v239
      %241 = vdwg.mxu0
      %242 = vst [vmem:[%s181] sm:$0xff] %v214
      %243 = vst [vmem:[%s181 + $0x8] sm:$0xff] %v237
      %244 = vst [vmem:[%s181 + $0x10] sm:$0xff] %v217
      %245 = vst [vmem:[%s181 + $0x18] sm:$0xff] %v240
      %s246 = smul.u32 2, %s18
      %p247 = scmp.lt.s32.totalorder %s17, 3
      %s248 = scalar_select %p247, %s17, 3
      %p249 = scmp.lt.s32.totalorder %s246, 1
      %s250 = scalar_select %p249, %s246, 1
      %s251 = smul.addr %s248, 4
      %s252 = sadd.s32 %s250, %s251
      %s253 = smul.addr %s252, 8
      %s254 = scalar_lea.vmem %s2, %s253
      // Predicated region
      $region29: #{_lambda_.3} parent=27 // pred_check
        %p255 = pneg %p94
      $region30: #{_lambda_.3} parent=27 // pred_check_branch
        %257 = sbr.rel (%p255) target = $region32
      $region31: #{_lambda_.3} parent=27 // pred_region
        %s258 = smul.u32 2, %s18
      $region32: #{_lambda_.3} parent=27 // pred_fallthru
        _
    $region28: #{_lambda_.3} parent=5 // pred_fallthru
      _
    %p259 = scmp.le.s32.totalorder 2, %s8
    // Predicated region
    $region33: #{_lambda_.3} parent=5 // pred_check
      %p260 = pneg %p259
    $region34: #{_lambda_.3} parent=5 // pred_check_branch
      %262 = sbr.rel (%p260) target = $region36
    $region35: #{_lambda_.3} parent=5 // pred_region
      %s263 = ssub.s32 %s8, 2
      // Predicated region
      $region37: #{_lambda_.3} parent=35 // pred_check
        %p264 = pneg %p100
      $region38: #{_lambda_.3} parent=35 // pred_check_branch
        %266 = sbr.rel (%p264) target = $region40
      $region39: #{_lambda_.3} parent=35 // pred_region
        %s267 = smul.u32 2, %s20
        %p268 = scmp.lt.s32.totalorder %s19, 3
        %s269 = scalar_select %p268, %s19, 3
        %p270 = scmp.lt.s32.totalorder %s267, 1
        %s271 = scalar_select %p270, %s267, 1
        %s272 = smul.addr %s269, 4
        %s273 = sadd.s32 %s271, %s272
        %s274 = smul.addr %s273, 8
        %s275 = scalar_lea.vmem %s2, %s274
      $region40: #{_lambda_.3} parent=35 // pred_fallthru
        _
    $region36: #{_lambda_.3} parent=5 // pred_fallthru
      _
  $region6: #{_lambda_.3} parent=0 // loop_footer
    %s12 = sadd.s32 1, %s8
  $region7: #{_lambda_.3} parent=0 // loop_footer_branch
    %7 = sbr.rel target = $region3
  $region8: #{_lambda_.3} parent=0 // loop_exit
    _

</llo_original>
